<compile_context>
chip_gen: v5e
topology: v5e:2x2
jax: 0.10.0
libtpu: 0.0.40
codegen_flags: <defaults>
</compile_context>

<pallas_src>
import jax
import jax.numpy as jnp
from jax.experimental import pallas as pl
from jax.experimental.pallas import tpu as pltpu


def _round_up(n, m):
    return ((n + m - 1) // m) * m


# --------------------------------------------------------------------------
# Kernel
# --------------------------------------------------------------------------
def _make_mlp_kernel(n_hidden, scalar_out):
    """Fused MLP kernel over one batch tile.

    refs = (x_ref, w1, b1, ..., wn, bn, w_out, b_out, o_ref).
    Hidden layers: bf16 (or compute_dtype) MXU matmul, f32 accumulate, bias +
    ReLU on the VPU in f32.  Output layer:
      * scalar_out: VPU multiply with a (1, hidden_p) f32 row + lane reduction
        -> (tile_b, 1) f32 store (no padded 128-wide writeback).
      * otherwise:  MXU matmul into a (tile_b, out_p) f32 store.
    """
    def kernel(*refs):
        x_ref, o_ref = refs[0], refs[-1]
        wb = refs[1:-1]

        h = x_ref[...]                       # f32 tile; cast happens at the dot
        for l in range(n_hidden):
            w_ref, b_ref = wb[2 * l], wb[2 * l + 1]
            h = jnp.dot(h.astype(w_ref.dtype), w_ref[...],
                        preferred_element_type=jnp.float32)
            h = jnp.maximum(h + b_ref[...], 0.0)

        w_ref, b_ref = wb[-2], wb[-1]
        if scalar_out:
            # out[b] = sum_j h[b, j] * w[j] + b   (VPU mul + XLU lane-reduce)
            out = jnp.sum(h * w_ref[...], axis=1, keepdims=True) + b_ref[...]
        else:
            out = jnp.dot(h.astype(w_ref.dtype), w_ref[...],
                          preferred_element_type=jnp.float32) + b_ref[...]
        o_ref[...] = out.astype(o_ref.dtype)

    return kernel


# --------------------------------------------------------------------------
# One-time parameter preparation (hoisted out of the forward hot path)
# --------------------------------------------------------------------------
def prepare_params(params, *, compute_dtype=jnp.bfloat16):
    """Pad hidden widths to 128 lanes, cast matmul weights to compute_dtype,
    and reshape a scalar output layer into a (1, hidden_p) f32 row.

    params = (w1, b1, ..., wk, bk) with weights stored transposed as
    (in_features, out_features) and biases as (1, out_features), float32.
    Zero padding keeps the math exact (ReLU(0) = 0 feeding zero weights).
    """
    assert len(params) >= 2 and len(params) % 2 == 0
    ws, bs = list(params[0::2]), list(params[1::2])
    n_layers = len(ws)
    in_dim = ws[0].shape[0]
    out_dim = ws[-1].shape[1]
    scalar_out = (out_dim == 1)

    arrays, hidden_p = [], []
    prev_p = in_dim                                  # x stays unpadded
    for l in range(n_layers - 1):                    # hidden layers
        w, b = ws[l], bs[l]
        d = w.shape[1]
        d_p = _round_up(d, 128)
        arrays.append(jnp.pad(w, ((0, prev_p - w.shape[0]), (0, d_p - d)))
                      .astype(compute_dtype))
        arrays.append(jnp.pad(b.reshape(1, -1), ((0, 0), (0, d_p - d)))
                      .astype(jnp.float32))          # biases stay f32
        hidden_p.append(d_p)
        prev_p = d_p

    w, b = ws[-1], bs[-1]
    if scalar_out:
        w_row = (jnp.pad(w, ((0, prev_p - w.shape[0]), (0, 0)))
                 .astype(jnp.float32).reshape(1, prev_p))
        arrays += [w_row, b.reshape(1, 1).astype(jnp.float32)]
        out_cols = 1
    else:
        out_cols = _round_up(out_dim, 128)
        arrays.append(jnp.pad(w, ((0, prev_p - w.shape[0]),
                                  (0, out_cols - out_dim))).astype(compute_dtype))
        arrays.append(jnp.pad(b.reshape(1, -1), ((0, 0), (0, out_cols - out_dim)))
                      .astype(jnp.float32))

    return dict(arrays=tuple(arrays), n_hidden=n_layers - 1, in_dim=in_dim,
                out_dim=out_dim, out_cols=out_cols, scalar_out=scalar_out,
                hidden_p=tuple(hidden_p))


# --------------------------------------------------------------------------
# Forward
# --------------------------------------------------------------------------
def mlp_forward(x, prepared, *, tile_b=512):
    """Fused MLP forward.  x: (batch, in_dim) float32.  Returns the
    equivalent of PyTorch's `out.view(B, -1).squeeze()`."""
    arrays = prepared["arrays"]
    out_dim, out_cols = prepared["out_dim"], prepared["out_cols"]
    batch, in_dim = x.shape
    assert in_dim == prepared["in_dim"]

    # --- batch tile: whole batch, or a multiple-of-8 sublane tile ----------
    tile_b = int(min(tile_b, batch))
    if tile_b < batch:
        tile_b = max(8, (tile_b // 8) * 8)

    # --- VMEM budget: resident weights (double-buffered) + x/out tiles -----
    weight_bytes = 2 * sum(a.size * a.dtype.itemsize for a in arrays)
    per_row = 4 * (2 * in_dim + 2 * out_cols + sum(prepared["hidden_p"]))
    while tile_b > 8 and weight_bytes + tile_b * per_row > 12 * 1024 * 1024:
        tile_b = max(8, (tile_b // 2 // 8) * 8)
    est_bytes = weight_bytes + tile_b * per_row

    cp_kwargs = dict(dimension_semantics=("parallel",))   # 2-TC sharding on v7x
    if est_bytes > 14 * 1024 * 1024:
        cp_kwargs["vmem_limit_bytes"] = int(min(est_bytes * 5 // 4, 32 * 1024 * 1024))

    grid = (pl.cdiv(batch, tile_b),)
    in_specs = [pl.BlockSpec((tile_b, in_dim), lambda i: (i, 0))]       # x: batch-tiled
    in_specs += [pl.BlockSpec(a.shape, lambda i: (0, 0)) for a in arrays]  # VMEM-resident

    out = pl.pallas_call(
        _make_mlp_kernel(prepared["n_hidden"], prepared["scalar_out"]),
        out_shape=jax.ShapeDtypeStruct((batch, out_cols), jnp.float32),
        grid=grid,
        in_specs=in_specs,
        out_specs=pl.BlockSpec((tile_b, out_cols), lambda i: (i, 0)),
        compiler_params=pltpu.CompilerParams(**cp_kwargs),
    )(x, *arrays)

    if out_cols != out_dim:          # only the padded (out_dim > 1) path
        out = out[:, :out_dim]
    return jnp.squeeze(out.reshape(batch, -1))


# --------------------------------------------------------------------------
# Init + references
# --------------------------------------------------------------------------
def init_params(key, input_dim, hidden_layer_dims, output_dim):
    """Deterministic init mimicking nn.Linear's uniform(-1/sqrt(fan_in), +)."""
    dims = [input_dim] + list(hidden_layer_dims) + [output_dim]
    params = []
    for i in range(len(dims) - 1):
        fan_in, fan_out = dims[i], dims[i + 1]
        key, kw, kb = jax.random.split(key, 3)
        bound = 1.0 / jnp.sqrt(jnp.float32(fan_in))
        w = jax.random.uniform(kw, (fan_in, fan_out), jnp.float32, -bound, bound)
        b = jax.random.uniform(kb, (1, fan_out), jnp.float32, -bound, bound)
        params.extend([w, b])
    return tuple(params)


def reference_forward_f32(x, params):
    ws, bs = params[0::2], params[1::2]
    h = x
    for w, b in zip(ws[:-1], bs[:-1]):
        h = jnp.maximum(h @ w + b, 0.0)
    out = h @ ws[-1] + bs[-1]
    return jnp.squeeze(out.reshape(out.shape[0], -1))


def reference_forward_matched(x, params, compute_dtype=jnp.bfloat16):
    """Same math as the kernel: compute_dtype matmul operands, f32 accumulate,
    f32 VPU reduction for a scalar output layer."""
    ws, bs = params[0::2], params[1::2]
    h = x
    for w, b in zip(ws[:-1], bs[:-1]):
        h = jnp.dot(h.astype(compute_dtype), w.astype(compute_dtype),
                    preferred_element_type=jnp.float32)
        h = jnp.maximum(h + b, 0.0)
    w, b = ws[-1], bs[-1]
    if w.shape[1] == 1:
        out = jnp.sum(h * w.reshape(1, -1), axis=1, keepdims=True) + b
    else:
        out = jnp.dot(h.astype(compute_dtype), w.astype(compute_dtype),
                      preferred_element_type=jnp.float32) + b
    return jnp.squeeze(out.reshape(out.shape[0], -1))


if __name__ == "__main__":
    # Small shapes consistent with the module (scalar-output MLP regressor).
    batch, input_dim, output_dim = 256, 16, 1
    hidden_layer_dims = (32, 32)

    key = jax.random.PRNGKey(0)
    key, kx = jax.random.split(key)
    x = jax.random.normal(kx, (batch, input_dim), jnp.float32)
    params = init_params(key, input_dim, hidden_layer_dims, output_dim)

    prepared = prepare_params(params)                 # one-time pad/cast (hoisted)
    fwd = jax.jit(lambda xx: mlp_forward(xx, prepared, tile_b=128))  # grid of 2 steps

    out = jax.block_until_ready(fwd(x))

    ref_match = reference_forward_matched(x, params)
    ref_f32 = reference_forward_f32(x, params)

    assert out.shape == ref_f32.shape == (batch,), (out.shape, ref_f32.shape)
    # Kernel matches the same-math reference closely (bf16 operands, f32 acc).
    assert jnp.allclose(out, ref_match, atol=1e-4, rtol=1e-3), \
        float(jnp.max(jnp.abs(out - ref_match)))
    # And the pure-f32 reference within bf16 rounding of the hidden layers.
    assert jnp.allclose(out, ref_f32, atol=5e-2, rtol=5e-2), \
        float(jnp.max(jnp.abs(out - ref_f32)))

    print("KERNEL_OK")
</pallas_src>

<mosaic_0001>
module attributes {stable_mosaic.version = 11 : i64} {
  func.func @kernel(%arg0: i32, %arg1: memref<128x16xf32, #tpu.memory_space<vmem>>, %arg2: memref<16x128xbf16, #tpu.memory_space<vmem>>, %arg3: memref<1x128xf32, #tpu.memory_space<vmem>>, %arg4: memref<128x128xbf16, #tpu.memory_space<vmem>>, %arg5: memref<1x128xf32, #tpu.memory_space<vmem>>, %arg6: memref<1x128xf32, #tpu.memory_space<vmem>>, %arg7: memref<1x1xf32, #tpu.memory_space<vmem>>, %arg8: memref<128x1xf32, #tpu.memory_space<vmem>>) attributes {dimension_semantics = [#tpu.dimension_semantics<parallel>], iteration_bounds = array<i64: 2>, scalar_prefetch = 0 : i64, scratch_operands = 0 : i64, tpu.core_type = #tpu.core_type<tc>, window_params = [{transform_indices = @transform_0, window_bounds = array<i64: 128, 16>}, {pipeline_mode = #tpu.pipeline_mode<synchronous>, transform_indices = @transform_1, window_bounds = array<i64: 16, 128>}, {pipeline_mode = #tpu.pipeline_mode<synchronous>, transform_indices = @transform_2, window_bounds = array<i64: 1, 128>}, {pipeline_mode = #tpu.pipeline_mode<synchronous>, transform_indices = @transform_3, window_bounds = array<i64: 128, 128>}, {pipeline_mode = #tpu.pipeline_mode<synchronous>, transform_indices = @transform_4, window_bounds = array<i64: 1, 128>}, {pipeline_mode = #tpu.pipeline_mode<synchronous>, transform_indices = @transform_5, window_bounds = array<i64: 1, 128>}, {pipeline_mode = #tpu.pipeline_mode<synchronous>, transform_indices = @transform_6, window_bounds = array<i64: 1, 1>}, {transform_indices = @transform_7, window_bounds = array<i64: 128, 1>}]} {
    %c0 = arith.constant 0 : index
    %c0_0 = arith.constant 0 : index
    %0 = vector.load %arg1[%c0, %c0_0] : memref<128x16xf32, #tpu.memory_space<vmem>>, vector<128x16xf32>
    %1 = arith.truncf %0 : vector<128x16xf32> to vector<128x16xbf16>
    %c0_1 = arith.constant 0 : index
    %c0_2 = arith.constant 0 : index
    %2 = vector.load %arg2[%c0_1, %c0_2] : memref<16x128xbf16, #tpu.memory_space<vmem>>, vector<16x128xbf16>
    %cst = arith.constant dense<0.000000e+00> : vector<128x128xf32>
    %3 = tpu.matmul %1, %2, %cst {dimension_numbers = #tpu.dot_dimension_numbers<[1], [0], [0], [1], [0, 0, 1, 1], [], []>} : vector<128x16xbf16>, vector<16x128xbf16>, vector<128x128xf32> -> vector<128x128xf32>
    %c0_3 = arith.constant 0 : index
    %c0_4 = arith.constant 0 : index
    %4 = vector.load %arg3[%c0_3, %c0_4] : memref<1x128xf32, #tpu.memory_space<vmem>>, vector<1x128xf32>
    %5 = vector.broadcast %4 : vector<1x128xf32> to vector<128x128xf32>
    %6 = arith.addf %3, %5 : vector<128x128xf32>
    %cst_5 = arith.constant 0.000000e+00 : f32
    %7 = vector.broadcast %cst_5 : f32 to vector<128x128xf32>
    %8 = arith.maximumf %6, %7 : vector<128x128xf32>
    %9 = arith.truncf %8 : vector<128x128xf32> to vector<128x128xbf16>
    %c0_6 = arith.constant 0 : index
    %c0_7 = arith.constant 0 : index
    %10 = vector.load %arg4[%c0_6, %c0_7] : memref<128x128xbf16, #tpu.memory_space<vmem>>, vector<128x128xbf16>
    %cst_8 = arith.constant dense<0.000000e+00> : vector<128x128xf32>
    %11 = tpu.matmul %9, %10, %cst_8 {dimension_numbers = #tpu.dot_dimension_numbers<[1], [0], [0], [1], [0, 0, 1, 1], [], []>} : vector<128x128xbf16>, vector<128x128xbf16>, vector<128x128xf32> -> vector<128x128xf32>
    %c0_9 = arith.constant 0 : index
    %c0_10 = arith.constant 0 : index
    %12 = vector.load %arg5[%c0_9, %c0_10] : memref<1x128xf32, #tpu.memory_space<vmem>>, vector<1x128xf32>
    %13 = vector.broadcast %12 : vector<1x128xf32> to vector<128x128xf32>
    %14 = arith.addf %11, %13 : vector<128x128xf32>
    %cst_11 = arith.constant 0.000000e+00 : f32
    %15 = vector.broadcast %cst_11 : f32 to vector<128x128xf32>
    %16 = arith.maximumf %14, %15 : vector<128x128xf32>
    %c0_12 = arith.constant 0 : index
    %c0_13 = arith.constant 0 : index
    %17 = vector.load %arg6[%c0_12, %c0_13] : memref<1x128xf32, #tpu.memory_space<vmem>>, vector<1x128xf32>
    %18 = vector.broadcast %17 : vector<1x128xf32> to vector<128x128xf32>
    %19 = arith.mulf %16, %18 : vector<128x128xf32>
    %cst_14 = arith.constant dense<0.000000e+00> : vector<128xf32>
    %20 = vector.multi_reduction <add>, %19, %cst_14 [1] : vector<128x128xf32> to vector<128xf32>
    %21 = vector.shape_cast %20 : vector<128xf32> to vector<128x1xf32>
    %c0_15 = arith.constant 0 : index
    %c0_16 = arith.constant 0 : index
    %22 = vector.load %arg7[%c0_15, %c0_16] : memref<1x1xf32, #tpu.memory_space<vmem>>, vector<1x1xf32>
    %23 = vector.broadcast %22 : vector<1x1xf32> to vector<128x1xf32>
    %24 = arith.addf %21, %23 : vector<128x1xf32>
    %c0_17 = arith.constant 0 : index
    %c0_18 = arith.constant 0 : index
    %25 = vector.load %arg8[%c0_17, %c0_18] : memref<128x1xf32, #tpu.memory_space<vmem>>, vector<128x1xf32>
    tpu.vector_store %arg8[%c0_17, %c0_18], %24 {strides = array<i32>} : memref<128x1xf32, #tpu.memory_space<vmem>>, vector<128x1xf32>,
    return
  }
  func.func @transform_0(%arg0: i32) -> (i32, i32) {
    %c0_i32 = arith.constant 0 : i32
    %c0_i32_0 = arith.constant 0 : i32
    return %arg0, %c0_i32 : i32, i32
  }
  func.func @transform_1(%arg0: i32) -> (i32, i32) {
    %c0_i32 = arith.constant 0 : i32
    %c0_i32_0 = arith.constant 0 : i32
    %c0_i32_1 = arith.constant 0 : i32
    return %c0_i32, %c0_i32_0 : i32, i32
  }
  func.func @transform_2(%arg0: i32) -> (i32, i32) {
    %c0_i32 = arith.constant 0 : i32
    %c0_i32_0 = arith.constant 0 : i32
    %c0_i32_1 = arith.constant 0 : i32
    return %c0_i32, %c0_i32_0 : i32, i32
  }
  func.func @transform_3(%arg0: i32) -> (i32, i32) {
    %c0_i32 = arith.constant 0 : i32
    %c0_i32_0 = arith.constant 0 : i32
    %c0_i32_1 = arith.constant 0 : i32
    return %c0_i32, %c0_i32_0 : i32, i32
  }
  func.func @transform_4(%arg0: i32) -> (i32, i32) {
    %c0_i32 = arith.constant 0 : i32
    %c0_i32_0 = arith.constant 0 : i32
    %c0_i32_1 = arith.constant 0 : i32
    return %c0_i32, %c0_i32_0 : i32, i32
  }
  func.func @transform_5(%arg0: i32) -> (i32, i32) {
    %c0_i32 = arith.constant 0 : i32
    %c0_i32_0 = arith.constant 0 : i32
    %c0_i32_1 = arith.constant 0 : i32
    return %c0_i32, %c0_i32_0 : i32, i32
  }
  func.func @transform_6(%arg0: i32) -> (i32, i32) {
    %c0_i32 = arith.constant 0 : i32
    %c0_i32_0 = arith.constant 0 : i32
    %c0_i32_1 = arith.constant 0 : i32
    return %c0_i32, %c0_i32_0 : i32, i32
  }
  func.func @transform_7(%arg0: i32) -> (i32, i32) {
    %c0_i32 = arith.constant 0 : i32
    %c0_i32_0 = arith.constant 0 : i32
    return %arg0, %c0_i32 : i32, i32
  }
}

</mosaic_0001>

<llo_original>
// kernel: _lambda_.1
$region0: #{_lambda_.1}
  #allocation0 [shape = 'u32[]', space=smem, size = 0x4, offset = 0x4, fixed_abs, tag = 'smem constant byte address 0x4 - core index']
  #allocation1 [shape = 'u32[72,128]{1,0:T(1,128)}', space=vmem, size = 0x9000, scoped, tag = 'internal scratch']
  #allocation2 [shape = 'f32[1,1]{1,0:T(1,128)S(1)}', space=vmem, size = 0x200, scoped, tag = 'scoped memory for _lambda_.1']
  %s0 = inlined_call_operand.vmem [shape: f32[256,16], index: 0, kind: input, shape index: {}]
  %s1 = inlined_call_operand.vmem [shape: bf16[16,128], index: 1, kind: input, shape index: {}]
  %s2 = inlined_call_operand.vmem [shape: f32[1,128], index: 2, kind: input, shape index: {}]
  %s3 = inlined_call_operand.vmem [shape: bf16[128,128], index: 3, kind: input, shape index: {}]
  %s4 = inlined_call_operand.vmem [shape: f32[1,128], index: 4, kind: input, shape index: {}]
  %s5 = inlined_call_operand.vmem [shape: f32[1,128], index: 5, kind: input, shape index: {}]
  %s6 = inlined_call_operand.<no memory space> [shape: f32[1,1], index: 6, kind: input, shape index: {}]
  %s7 = inlined_call_operand.vmem [shape: f32[256,1], index: 7, kind: output, shape index: {}]
  %s8 = sld [smem:[#allocation0]]
  $region61: #{_lambda_.1} parent=0
    _
  %s10 = ssub.s32 1, %s8
  %s11 = scalar_select 0, %s10, %s8
  %v12 = vstv %s6
  %13 = vst [vmem:[#allocation2] sm:$0x1] %v12
  loop: start=0, step=1, limit=4
  $region2: #{_lambda_.1} parent=0 // loop_pre_header
    _
  $region3: #{_lambda_.1} parent=0 // loop_header
    %s15 = sphi 0, %s19
    %p16 = scmp.ge.s32.totalorder %s15, 4
    %s25 = sphi 0, %s27
    %s28 = sphi 0, %s25
    %s29 = sphi 0, %s28
    %s45 = sphi 0, %s29
    %s49 = sphi 0, %s49
    %s51 = sphi 0, %s49
    %s52 = sphi 0, %s51
    %s66 = sphi 0, %s52
    %s70 = sphi 0, %s70
    %s72 = sphi 0, %s70
    %s73 = sphi 0, %s72
    %s87 = sphi 0, %s73
    %s91 = sphi 0, %s91
    %s93 = sphi 0, %s91
    %s94 = sphi 0, %s93
    %s108 = sphi 0, %s94
    %s112 = sphi 0, %s112
    %s114 = sphi 0, %s112
    %s115 = sphi 0, %s114
    %s129 = sphi 0, %s115
    %s133 = sphi 0, %s133
    %s135 = sphi 0, %s133
    %s136 = sphi 0, %s135
    %s150 = sphi 0, %s136
    %s154 = sphi 0, %s154
    %s156 = sphi 0, %s154
    %s157 = sphi 0, %s156
    %s171 = sphi 0, %s157
    %s177 = sphi 0, %s179
    %s180 = sphi 0, %s177
    %s181 = sphi 0, %s180
    %s197 = sphi 0, %s181
  $region4: #{_lambda_.1} parent=0 // loop_header_branch
    %18 = sbr.rel (%p16) target = $region8
  $region5: #{_lambda_.1} parent=0 // loop_body
    %s20 = ssub.s32 %s15, 1
    %s21 = ssub.s32 %s15, 2
    %s22 = sadd.s32 %s15, 1
    %s23 = ssub.s32 %s15, %s22
    %p24 = scmp.eq.s32.totalorder %s23, 0
    %s26 = sadd.s32 %s25, 1
    %s27 = scalar_select %p24, %s25, %s26
    %p30 = pneg %p24
    %p31 = scmp.eq.s32.totalorder %s15, 1
    %p32 = por %p30, %p31
    %p33 = scmp.ne.s32.totalorder %s25, %s28
    %p34 = scmp.eq.s32.totalorder %s15, 0
    %p35 = por %p33, %p34
    %p36 = scmp.ne.s32.totalorder %s25, %s28
    %p37 = scmp.eq.s32.totalorder %s20, 1
    %p38 = por %p36, %p37
    %p39 = scmp.ne.s32.totalorder %s28, %s29
    %p40 = scmp.eq.s32.totalorder %s20, 0
    %p41 = por %p39, %p40
    %p42 = scmp.ne.s32.totalorder %s28, %s29
    %p43 = scmp.eq.s32.totalorder %s21, 1
    %p44 = por %p42, %p43
    %p46 = scmp.ne.s32.totalorder %s29, %s45
    %p47 = scmp.eq.s32.totalorder %s21, 0
    %p48 = por %p46, %p47
    %s50 = sadd.s32 %s49, 1
    %p53 = scmp.eq.s32.totalorder %s15, 1
    %p54 = scmp.ne.s32.totalorder %s49, %s51
    %p55 = scmp.eq.s32.totalorder %s15, 0
    %p56 = por %p54, %p55
    %p57 = scmp.ne.s32.totalorder %s49, %s51
    %p58 = scmp.eq.s32.totalorder %s20, 1
    %p59 = por %p57, %p58
    %p60 = scmp.ne.s32.totalorder %s51, %s52
    %p61 = scmp.eq.s32.totalorder %s20, 0
    %p62 = por %p60, %p61
    %p63 = scmp.ne.s32.totalorder %s51, %s52
    %p64 = scmp.eq.s32.totalorder %s21, 1
    %p65 = por %p63, %p64
    %p67 = scmp.ne.s32.totalorder %s52, %s66
    %p68 = scmp.eq.s32.totalorder %s21, 0
    %p69 = por %p67, %p68
    %s71 = sadd.s32 %s70, 1
    %p74 = scmp.eq.s32.totalorder %s15, 1
    %p75 = scmp.ne.s32.totalorder %s70, %s72
    %p76 = scmp.eq.s32.totalorder %s15, 0
    %p77 = por %p75, %p76
    %p78 = scmp.ne.s32.totalorder %s70, %s72
    %p79 = scmp.eq.s32.totalorder %s20, 1
    %p80 = por %p78, %p79
    %p81 = scmp.ne.s32.totalorder %s72, %s73
    %p82 = scmp.eq.s32.totalorder %s20, 0
    %p83 = por %p81, %p82
    %p84 = scmp.ne.s32.totalorder %s72, %s73
    %p85 = scmp.eq.s32.totalorder %s21, 1
    %p86 = por %p84, %p85
    %p88 = scmp.ne.s32.totalorder %s73, %s87
    %p89 = scmp.eq.s32.totalorder %s21, 0
    %p90 = por %p88, %p89
    %s92 = sadd.s32 %s91, 1
    %p95 = scmp.eq.s32.totalorder %s15, 1
    %p96 = scmp.ne.s32.totalorder %s91, %s93
    %p97 = scmp.eq.s32.totalorder %s15, 0
    %p98 = por %p96, %p97
    %p99 = scmp.ne.s32.totalorder %s91, %s93
    %p100 = scmp.eq.s32.totalorder %s20, 1
    %p101 = por %p99, %p100
    %p102 = scmp.ne.s32.totalorder %s93, %s94
    %p103 = scmp.eq.s32.totalorder %s20, 0
    %p104 = por %p102, %p103
    %p105 = scmp.ne.s32.totalorder %s93, %s94
    %p106 = scmp.eq.s32.totalorder %s21, 1
    %p107 = por %p105, %p106
    %p109 = scmp.ne.s32.totalorder %s94, %s108
    %p110 = scmp.eq.s32.totalorder %s21, 0
    %p111 = por %p109, %p110
    %s113 = sadd.s32 %s112, 1
    %p116 = scmp.eq.s32.totalorder %s15, 1
    %p117 = scmp.ne.s32.totalorder %s112, %s114
    %p118 = scmp.eq.s32.totalorder %s15, 0
    %p119 = por %p117, %p118
    %p120 = scmp.ne.s32.totalorder %s112, %s114
    %p121 = scmp.eq.s32.totalorder %s20, 1
    %p122 = por %p120, %p121
    %p123 = scmp.ne.s32.totalorder %s114, %s115
    %p124 = scmp.eq.s32.totalorder %s20, 0
    %p125 = por %p123, %p124
    %p126 = scmp.ne.s32.totalorder %s114, %s115
    %p127 = scmp.eq.s32.totalorder %s21, 1
    %p128 = por %p126, %p127
    %p130 = scmp.ne.s32.totalorder %s115, %s129
    %p131 = scmp.eq.s32.totalorder %s21, 0
    %p132 = por %p130, %p131
    %s134 = sadd.s32 %s133, 1
    %p137 = scmp.eq.s32.totalorder %s15, 1
    %p138 = scmp.ne.s32.totalorder %s133, %s135
    %p139 = scmp.eq.s32.totalorder %s15, 0
    %p140 = por %p138, %p139
    %p141 = scmp.ne.s32.totalorder %s133, %s135
    %p142 = scmp.eq.s32.totalorder %s20, 1
    %p143 = por %p141, %p142
    %p144 = scmp.ne.s32.totalorder %s135, %s136
    %p145 = scmp.eq.s32.totalorder %s20, 0
    %p146 = por %p144, %p145
    %p147 = scmp.ne.s32.totalorder %s135, %s136
    %p148 = scmp.eq.s32.totalorder %s21, 1
    %p149 = por %p147, %p148
    %p151 = scmp.ne.s32.totalorder %s136, %s150
    %p152 = scmp.eq.s32.totalorder %s21, 0
    %p153 = por %p151, %p152
    %s155 = sadd.s32 %s154, 1
    %p158 = scmp.eq.s32.totalorder %s15, 1
    %p159 = scmp.ne.s32.totalorder %s154, %s156
    %p160 = scmp.eq.s32.totalorder %s15, 0
    %p161 = por %p159, %p160
    %p162 = scmp.ne.s32.totalorder %s154, %s156
    %p163 = scmp.eq.s32.totalorder %s20, 1
    %p164 = por %p162, %p163
    %p165 = scmp.ne.s32.totalorder %s156, %s157
    %p166 = scmp.eq.s32.totalorder %s20, 0
    %p167 = por %p165, %p166
    %p168 = scmp.ne.s32.totalorder %s156, %s157
    %p169 = scmp.eq.s32.totalorder %s21, 1
    %p170 = por %p168, %p169
    %p172 = scmp.ne.s32.totalorder %s157, %s171
    %p173 = scmp.eq.s32.totalorder %s21, 0
    %p174 = por %p172, %p173
    %s175 = ssub.s32 %s15, %s22
    %p176 = scmp.eq.s32.totalorder %s175, 0
    %s178 = sadd.s32 %s177, 1
    %s179 = scalar_select %p176, %s177, %s178
    %p182 = pneg %p176
    %p183 = scmp.eq.s32.totalorder %s15, 1
    %p184 = por %p182, %p183
    %p185 = scmp.ne.s32.totalorder %s177, %s180
    %p186 = scmp.eq.s32.totalorder %s15, 0
    %p187 = por %p185, %p186
    %p188 = scmp.ne.s32.totalorder %s177, %s180
    %p189 = scmp.eq.s32.totalorder %s20, 1
    %p190 = por %p188, %p189
    %p191 = scmp.ne.s32.totalorder %s180, %s181
    %p192 = scmp.eq.s32.totalorder %s20, 0
    %p193 = por %p191, %p192
    %p194 = scmp.ne.s32.totalorder %s180, %s181
    %p195 = scmp.eq.s32.totalorder %s21, 1
    %p196 = por %p194, %p195
    %p198 = scmp.ne.s32.totalorder %s181, %s197
    %p199 = scmp.eq.s32.totalorder %s21, 0
    %p200 = por %p198, %p199
    %p201 = scmp.le.s32.totalorder 1, %s15
    %p202 = scmp.lt.s32.totalorder %s15, 3
    %p203 = pnand %p201, %p202
    %p204 = pneg %p203
    // Predicated region
    $region9: #{_lambda_.1} parent=5 // pred_check
      _
    $region10: #{_lambda_.1} parent=5 // pred_check_branch
      %206 = sbr.rel (%p203) target = $region12
    $region11: #{_lambda_.1} parent=5 // pred_region
      %s207 = ssub.s32 %s15, 1
      // Predicated region
      $region13: #{_lambda_.1} parent=11 // pred_check
        %p208 = pneg %p62
      $region14: #{_lambda_.1} parent=11 // pred_check_branch
        %210 = sbr.rel (%p208) target = $region16
      $region15: #{_lambda_.1} parent=11 // pred_region
        _
      $region16: #{_lambda_.1} parent=11 // pred_fallthru
        _
      // Predicated region
      $region17: #{_lambda_.1} parent=11 // pred_check
        %p211 = pneg %p83
      $region18: #{_lambda_.1} parent=11 // pred_check_branch
        %213 = sbr.rel (%p211) target = $region20
      $region19: #{_lambda_.1} parent=11 // pred_region
        _
      $region20: #{_lambda_.1} parent=11 // pred_fallthru
        _
      // Predicated region
      $region21: #{_lambda_.1} parent=11 // pred_check
        %p214 = pneg %p104
      $region22: #{_lambda_.1} parent=11 // pred_check_branch
        %216 = sbr.rel (%p214) target = $region24
      $region23: #{_lambda_.1} parent=11 // pred_region
        _
      $region24: #{_lambda_.1} parent=11 // pred_fallthru
        _
      // Predicated region
      $region25: #{_lambda_.1} parent=11 // pred_check
        %p217 = pneg %p125
      $region26: #{_lambda_.1} parent=11 // pred_check_branch
        %219 = sbr.rel (%p217) target = $region28
      $region27: #{_lambda_.1} parent=11 // pred_region
        _
      $region28: #{_lambda_.1} parent=11 // pred_fallthru
        _
      // Predicated region
      $region29: #{_lambda_.1} parent=11 // pred_check
        %p220 = pneg %p146
      $region30: #{_lambda_.1} parent=11 // pred_check_branch
        %222 = sbr.rel (%p220) target = $region32
      $region31: #{_lambda_.1} parent=11 // pred_region
        _
      $region32: #{_lambda_.1} parent=11 // pred_fallthru
        _
      // Predicated region
      $region33: #{_lambda_.1} parent=11 // pred_check
        %p223 = pneg %p167
      $region34: #{_lambda_.1} parent=11 // pred_check_branch
        %225 = sbr.rel (%p223) target = $region36
      $region35: #{_lambda_.1} parent=11 // pred_region
        _
      $region36: #{_lambda_.1} parent=11 // pred_fallthru
        _
    $region12: #{_lambda_.1} parent=5 // pred_fallthru
      _
    %p226 = scmp.lt.s32.totalorder %s15, 2
    // Predicated region
    $region37: #{_lambda_.1} parent=5 // pred_check
      %p227 = pneg %p226
    $region38: #{_lambda_.1} parent=5 // pred_check_branch
      %229 = sbr.rel (%p227) target = $region40
    $region39: #{_lambda_.1} parent=5 // pred_region
      // Predicated region
      $region41: #{_lambda_.1} parent=39 // pred_check
        %p230 = pneg %p35
      $region42: #{_lambda_.1} parent=39 // pred_check_branch
        %232 = sbr.rel (%p230) target = $region44
      $region43: #{_lambda_.1} parent=39 // pred_region
        %s233 = smul.u32 16, %s15
        %p234 = scmp.lt.s32.totalorder %s233, 31
        %s235 = scalar_select %p234, %s233, 31
        %s236 = smul.addr %s235, 8
        %s237 = scalar_lea.vmem %s0, %s236
        %s238 = smul.u32 16, %s15
      $region44: #{_lambda_.1} parent=39 // pred_fallthru
        _
    $region40: #{_lambda_.1} parent=5 // pred_fallthru
      _
    %p239 = scmp.le.s32.totalorder 1, %s15
    %p240 = scmp.lt.s32.totalorder %s15, 3
    %p241 = pnand %p239, %p240
    %p242 = pneg %p241
    // Predicated region
    $region45: #{_lambda_.1} parent=5 // pred_check
      _
    $region46: #{_lambda_.1} parent=5 // pred_check_branch
      %244 = sbr.rel (%p241) target = $region48
    $region47: #{_lambda_.1} parent=5 // pred_region
      %s245 = ssub.s32 %s15, 1
      %s246 = smul.u32 16, %s20
      %p247 = scmp.lt.s32.totalorder %s246, 31
      %s248 = scalar_select %p247, %s246, 31
      %s249 = smul.addr %s248, 8
      %s250 = scalar_lea.vmem %s0, %s249
      %p251 = pneg %p41
      %p252 = pneg %p38
      %p253 = pneg %p62
      %p254 = pneg %p59
      %p255 = pneg %p83
      %p256 = pneg %p80
      %p257 = pneg %p104
      %p258 = pneg %p101
      %p259 = pneg %p125
      %p260 = pneg %p122
      %p261 = pneg %p146
      %p262 = pneg %p143
      %p263 = pneg %p167
      %p264 = pneg %p164
      %p265 = pneg %p193
      %p266 = pneg %p190
      %s267 = smul.u32 16, %s20
      %p268 = scmp.lt.s32.totalorder %s267, 31
      %s269 = scalar_select %p268, %s267, 31
      %s270 = smul.addr %s269, 8
      %s271 = scalar_lea.vmem %s7, %s270
      %s272 = smul.u32 16, %s20
      %p273 = scmp.lt.s32.totalorder %s272, 31
      %s274 = scalar_select %p273, %s272, 31
      %s275 = smul.addr %s274, 8
      %s276 = scalar_lea.vmem %s0, %s275
      %s277 = smul.u32 16, %s20
      %s278 = smul.u32 16, %s20
      %p279 = scmp.lt.s32.totalorder %s278, 31
      %s280 = scalar_select %p279, %s278, 31
      %s281 = smul.addr %s280, 8
      %s282 = scalar_lea.vmem %s7, %s281
      %s283 = smul.u32 16, %s20
      %v285 = vld [vmem:[%s276] sm:$0xff]
      %v286 = vld [vmem:[%s276 + $0x8] sm:$0xff]
      %v287 = vld [vmem:[%s276 + $0x10] sm:$0xff]
      %v288 = vld [vmem:[%s276 + $0x18] sm:$0xff]
      %v289 = vld [vmem:[%s276 + $0x20] sm:$0xff]
      %v290 = vld [vmem:[%s276 + $0x28] sm:$0xff]
      %v291 = vld [vmem:[%s276 + $0x30] sm:$0xff]
      %v292 = vld [vmem:[%s276 + $0x38] sm:$0xff]
      %v293 = vld [vmem:[%s276 + $0x40] sm:$0xff]
      %v294 = vld [vmem:[%s276 + $0x48] sm:$0xff]
      %v295 = vld [vmem:[%s276 + $0x50] sm:$0xff]
      %v296 = vld [vmem:[%s276 + $0x58] sm:$0xff]
      %v297 = vld [vmem:[%s276 + $0x60] sm:$0xff]
      %v298 = vld [vmem:[%s276 + $0x68] sm:$0xff]
      %v299 = vld [vmem:[%s276 + $0x70] sm:$0xff]
      %v300 = vld [vmem:[%s276 + $0x78] sm:$0xff]
      %v301 = vpack.c.bf16 %v286, %v285
      %v302 = vpack.c.bf16 %v288, %v287
      %v303 = vpack.c.bf16 %v290, %v289
      %v304 = vpack.c.bf16 %v292, %v291
      %v305 = vpack.c.bf16 %v294, %v293
      %v306 = vpack.c.bf16 %v296, %v295
      %v307 = vpack.c.bf16 %v298, %v297
      %v308 = vpack.c.bf16 %v300, %v299
      %v309 = vld [vmem:[%s1] sm:$0xf]
      %v310 = vld [vmem:[%s1 + $0x4] sm:$0xf]
      %v311 = vld [vmem:[%s2] sm:$0x1]
      %v313 = vperm.slane %v311, 0
      %v317 = vunpack.c.l.b16 %v309
      %v318 = vunpack.c.l.b16 %v310
      %v319 = vpack.c.b16 %v318, %v317
      %vm321 = vcmask 130048
      %v323 = vsel %vm321, %v301, 0
      %v326 = vsel %vm321, %v302, 0
      %v329 = vsel %vm321, %v303, 0
      %v332 = vsel %vm321, %v304, 0
      %v335 = vsel %vm321, %v305, 0
      %v338 = vsel %vm321, %v306, 0
      %v341 = vsel %vm321, %v307, 0
      %v344 = vsel %vm321, %v308, 0
      %346 = vmatpush.bf16.msra.mxu0 0
      %347 = vmatpush.bf16.msra.mxu0 0
      %348 = vmatpush.bf16.msra.mxu0 0
      %349 = vmatpush.bf16.msra.mxu0 0
      %350 = vmatpush.bf16.msra.mxu0 0
      %351 = vmatpush.bf16.msra.mxu0 0
      %352 = vmatpush.bf16.msra.mxu0 0
      %353 = vmatpush.bf16.msra.mxu0 %v319
      %354 = vmatmul.bf16.gmra.mxu0 %v323
      %v355 = vpop.f32.mrf.mxu0
      %v356 = vadd.f32 %v313, %v355
      %v357 = vpop.f32.mrf.mxu0
      %v358 = vadd.f32 %v313, %v357
      %359 = vmatmul.bf16.gmra.mxu0 %v326
      %v360 = vpop.f32.mrf.mxu0
      %v361 = vadd.f32 %v313, %v360
      %v362 = vpop.f32.mrf.mxu0
      %v363 = vadd.f32 %v313, %v362
      %364 = vmatmul.bf16.gmra.mxu0 %v329
      %v365 = vpop.f32.mrf.mxu0
      %v366 = vadd.f32 %v313, %v365
      %v367 = vpop.f32.mrf.mxu0
      %v368 = vadd.f32 %v313, %v367
      %369 = vmatmul.bf16.gmra.mxu0 %v332
      %v370 = vpop.f32.mrf.mxu0
      %v371 = vadd.f32 %v313, %v370
      %v372 = vpop.f32.mrf.mxu0
      %v373 = vadd.f32 %v313, %v372
      %374 = vmatmul.bf16.gmra.mxu0 %v335
      %v375 = vpop.f32.mrf.mxu0
      %v376 = vadd.f32 %v313, %v375
      %v377 = vpop.f32.mrf.mxu0
      %v378 = vadd.f32 %v313, %v377
      %379 = vmatmul.bf16.gmra.mxu0 %v338
      %v380 = vpop.f32.mrf.mxu0
      %v381 = vadd.f32 %v313, %v380
      %v382 = vpop.f32.mrf.mxu0
      %v383 = vadd.f32 %v313, %v382
      %384 = vmatmul.bf16.gmra.mxu0 %v341
      %v385 = vpop.f32.mrf.mxu0
      %v386 = vadd.f32 %v313, %v385
      %v387 = vpop.f32.mrf.mxu0
      %v388 = vadd.f32 %v313, %v387
      %389 = vmatmul.bf16.gmra.mxu0 %v344
      %v390 = vpop.f32.mrf.mxu0
      %v391 = vadd.f32 %v313, %v390
      %v392 = vpop.f32.mrf.mxu0
      %v393 = vadd.f32 %v313, %v392
      %394 = vdwg.mxu0
      %v395 = vmax.f32 %v356, 0.0
      %v396 = vmax.f32 %v358, 0.0
      %v397 = vmax.f32 %v361, 0.0
      %v398 = vmax.f32 %v363, 0.0
      %v399 = vmax.f32 %v366, 0.0
      %v400 = vmax.f32 %v368, 0.0
      %v401 = vmax.f32 %v371, 0.0
      %v402 = vmax.f32 %v373, 0.0
      %v403 = vmax.f32 %v376, 0.0
      %v404 = vmax.f32 %v378, 0.0
      %v405 = vmax.f32 %v381, 0.0
      %v406 = vmax.f32 %v383, 0.0
      %v407 = vmax.f32 %v386, 0.0
      %v408 = vmax.f32 %v388, 0.0
      %v409 = vmax.f32 %v391, 0.0
      %v410 = vmax.f32 %v393, 0.0
      %v411 = vpack.c.bf16 %v396, %v395
      %v412 = vpack.c.bf16 %v398, %v397
      %v413 = vpack.c.bf16 %v400, %v399
      %v414 = vpack.c.bf16 %v402, %v401
      %v415 = vpack.c.bf16 %v404, %v403
      %v416 = vpack.c.bf16 %v406, %v405
      %v417 = vpack.c.bf16 %v408, %v407
      %v418 = vpack.c.bf16 %v410, %v409
      %v419 = vld [vmem:[%s3] sm:$0xf]
      %v420 = vld [vmem:[%s3 + $0x4] sm:$0xf]
      %v421 = vld [vmem:[%s3 + $0x8] sm:$0xf]
      %v422 = vld [vmem:[%s3 + $0xc] sm:$0xf]
      %v423 = vld [vmem:[%s3 + $0x10] sm:$0xf]
      %v424 = vld [vmem:[%s3 + $0x14] sm:$0xf]
      %v425 = vld [vmem:[%s3 + $0x18] sm:$0xf]
      %v426 = vld [vmem:[%s3 + $0x1c] sm:$0xf]
      %v427 = vld [vmem:[%s3 + $0x20] sm:$0xf]
      %v428 = vld [vmem:[%s3 + $0x24] sm:$0xf]
      %v429 = vld [vmem:[%s3 + $0x28] sm:$0xf]
      %v430 = vld [vmem:[%s3 + $0x2c] sm:$0xf]
      %v431 = vld [vmem:[%s3 + $0x30] sm:$0xf]
      %v432 = vld [vmem:[%s3 + $0x34] sm:$0xf]
      %v433 = vld [vmem:[%s3 + $0x38] sm:$0xf]
      %v434 = vld [vmem:[%s3 + $0x3c] sm:$0xf]
      %v435 = vld [vmem:[%s4] sm:$0x1]
      %v437 = vperm.slane %v435, 0
      %v455 = vunpack.c.l.b16 %v419
      %v456 = vunpack.c.l.b16 %v420
      %v457 = vunpack.c.l.b16 %v421
      %v458 = vunpack.c.l.b16 %v422
      %v459 = vunpack.c.l.b16 %v423
      %v460 = vunpack.c.l.b16 %v424
      %v461 = vunpack.c.l.b16 %v425
      %v462 = vunpack.c.l.b16 %v426
      %v463 = vunpack.c.l.b16 %v427
      %v464 = vunpack.c.l.b16 %v428
      %v465 = vunpack.c.l.b16 %v429
      %v466 = vunpack.c.l.b16 %v430
      %v467 = vunpack.c.l.b16 %v431
      %v468 = vunpack.c.l.b16 %v432
      %v469 = vunpack.c.l.b16 %v433
      %v470 = vunpack.c.l.b16 %v434
      %v471 = vpack.c.b16 %v456, %v455
      %v472 = vpack.c.b16 %v458, %v457
      %v473 = vpack.c.b16 %v460, %v459
      %v474 = vpack.c.b16 %v462, %v461
      %v475 = vpack.c.b16 %v464, %v463
      %v476 = vpack.c.b16 %v466, %v465
      %v477 = vpack.c.b16 %v468, %v467
      %v478 = vpack.c.b16 %v470, %v469
      %487 = vmatpush.bf16.msra.mxu0 %v478
      %488 = vmatpush.bf16.msra.mxu0 %v477
      %489 = vmatpush.bf16.msra.mxu0 %v476
      %490 = vmatpush.bf16.msra.mxu0 %v475
      %491 = vmatpush.bf16.msra.mxu0 %v474
      %492 = vmatpush.bf16.msra.mxu0 %v473
      %493 = vmatpush.bf16.msra.mxu0 %v472
      %494 = vmatpush.bf16.msra.mxu0 %v471
      %495 = vmatmul.bf16.gmra.mxu0 %v411
      %v496 = vpop.f32.mrf.mxu0
      %v497 = vadd.f32 %v437, %v496
      %v498 = vpop.f32.mrf.mxu0
      %v499 = vadd.f32 %v437, %v498
      %500 = vmatmul.bf16.gmra.mxu0 %v412
      %v501 = vpop.f32.mrf.mxu0
      %v502 = vadd.f32 %v437, %v501
      %v503 = vpop.f32.mrf.mxu0
      %v504 = vadd.f32 %v437, %v503
      %505 = vmatmul.bf16.gmra.mxu0 %v413
      %v506 = vpop.f32.mrf.mxu0
      %v507 = vadd.f32 %v437, %v506
      %v508 = vpop.f32.mrf.mxu0
      %v509 = vadd.f32 %v437, %v508
      %510 = vmatmul.bf16.gmra.mxu0 %v414
      %v511 = vpop.f32.mrf.mxu0
      %v512 = vadd.f32 %v437, %v511
      %v513 = vpop.f32.mrf.mxu0
      %v514 = vadd.f32 %v437, %v513
      %515 = vmatmul.bf16.gmra.mxu0 %v415
      %v516 = vpop.f32.mrf.mxu0
      %v517 = vadd.f32 %v437, %v516
      %v518 = vpop.f32.mrf.mxu0
      %v519 = vadd.f32 %v437, %v518
      %520 = vmatmul.bf16.gmra.mxu0 %v416
      %v521 = vpop.f32.mrf.mxu0
      %v522 = vadd.f32 %v437, %v521
      %v523 = vpop.f32.mrf.mxu0
      %v524 = vadd.f32 %v437, %v523
      %525 = vmatmul.bf16.gmra.mxu0 %v417
      %v526 = vpop.f32.mrf.mxu0
      %v527 = vadd.f32 %v437, %v526
      %v528 = vpop.f32.mrf.mxu0
      %v529 = vadd.f32 %v437, %v528
      %530 = vmatmul.bf16.gmra.mxu0 %v418
      %v531 = vpop.f32.mrf.mxu0
      %v532 = vadd.f32 %v437, %v531
      %v533 = vpop.f32.mrf.mxu0
      %v534 = vadd.f32 %v437, %v533
      %535 = vdwg.mxu0
      %v536 = vmax.f32 %v497, 0.0
      %v537 = vmax.f32 %v499, 0.0
      %v538 = vmax.f32 %v502, 0.0
      %v539 = vmax.f32 %v504, 0.0
      %v540 = vmax.f32 %v507, 0.0
      %v541 = vmax.f32 %v509, 0.0
      %v542 = vmax.f32 %v512, 0.0
      %v543 = vmax.f32 %v514, 0.0
      %v544 = vmax.f32 %v517, 0.0
      %v545 = vmax.f32 %v519, 0.0
      %v546 = vmax.f32 %v522, 0.0
      %v547 = vmax.f32 %v524, 0.0
      %v548 = vmax.f32 %v527, 0.0
      %v549 = vmax.f32 %v529, 0.0
      %v550 = vmax.f32 %v532, 0.0
      %v551 = vmax.f32 %v534, 0.0
      %v552 = vld [vmem:[%s5] sm:$0x1]
      %v554 = vperm.slane %v552, 0
      %v556 = vmul.f32 %v536, %v554
      %v557 = vmul.f32 %v537, %v554
      %v558 = vmul.f32 %v538, %v554
      %v559 = vmul.f32 %v539, %v554
      %v560 = vmul.f32 %v540, %v554
      %v561 = vmul.f32 %v541, %v554
      %v562 = vmul.f32 %v542, %v554
      %v563 = vmul.f32 %v543, %v554
      %v564 = vmul.f32 %v544, %v554
      %v565 = vmul.f32 %v545, %v554
      %v566 = vmul.f32 %v546, %v554
      %v567 = vmul.f32 %v547, %v554
      %v568 = vmul.f32 %v548, %v554
      %v569 = vmul.f32 %v549, %v554
      %v570 = vmul.f32 %v550, %v554
      %v571 = vmul.f32 %v551, %v554
      %572 = vadd.xlane.f32.xlu0 %v556
      %v573 = vpop.xlane.xlu0 %572
      %574 = vadd.xlane.f32.xlu0 %v557
      %v575 = vpop.xlane.xlu0 %574
      %576 = vadd.xlane.f32.xlu0 %v558
      %v577 = vpop.xlane.xlu0 %576
      %578 = vadd.xlane.f32.xlu0 %v559
      %v579 = vpop.xlane.xlu0 %578
      %580 = vadd.xlane.f32.xlu0 %v560
      %v581 = vpop.xlane.xlu0 %580
      %582 = vadd.xlane.f32.xlu0 %v561
      %v583 = vpop.xlane.xlu0 %582
      %584 = vadd.xlane.f32.xlu0 %v562
      %v585 = vpop.xlane.xlu0 %584
      %586 = vadd.xlane.f32.xlu0 %v563
      %v587 = vpop.xlane.xlu0 %586
      %588 = vadd.xlane.f32.xlu0 %v564
      %v589 = vpop.xlane.xlu0 %588
      %590 = vadd.xlane.f32.xlu0 %v565
      %v591 = vpop.xlane.xlu0 %590
      %592 = vadd.xlane.f32.xlu0 %v566
      %v593 = vpop.xlane.xlu0 %592
      %594 = vadd.xlane.f32.xlu0 %v567
      %v595 = vpop.xlane.xlu0 %594
      %596 = vadd.xlane.f32.xlu0 %v568
      %v597 = vpop.xlane.xlu0 %596
      %598 = vadd.xlane.f32.xlu0 %v569
      %v599 = vpop.xlane.xlu0 %598
      %600 = vadd.xlane.f32.xlu0 %v570
      %v601 = vpop.xlane.xlu0 %600
      %602 = vadd.xlane.f32.xlu0 %v571
      %v603 = vpop.xlane.xlu0 %602
      %v604 = vld [vmem:[#allocation2] sm:$0x1]
      %v606 = vperm.slane %v604, 0
      %v608 = vadd.f32 %v573, %v606
      %v609 = vadd.f32 %v575, %v606
      %v610 = vadd.f32 %v577, %v606
      %v611 = vadd.f32 %v579, %v606
      %v612 = vadd.f32 %v581, %v606
      %v613 = vadd.f32 %v583, %v606
      %v614 = vadd.f32 %v585, %v606
      %v615 = vadd.f32 %v587, %v606
      %v616 = vadd.f32 %v589, %v606
      %v617 = vadd.f32 %v591, %v606
      %v618 = vadd.f32 %v593, %v606
      %v619 = vadd.f32 %v595, %v606
      %v620 = vadd.f32 %v597, %v606
      %v621 = vadd.f32 %v599, %v606
      %v622 = vadd.f32 %v601, %v606
      %v623 = vadd.f32 %v603, %v606
      %vm624 = vcmask 7168
      %625 = vst.msk [vmem:[%s282] sm:$0xff] %vm624, %v608
      %626 = vst.msk [vmem:[%s282 + $0x8] sm:$0xff] %vm624, %v609
      %627 = vst.msk [vmem:[%s282 + $0x10] sm:$0xff] %vm624, %v610
      %628 = vst.msk [vmem:[%s282 + $0x18] sm:$0xff] %vm624, %v611
      %629 = vst.msk [vmem:[%s282 + $0x20] sm:$0xff] %vm624, %v612
      %630 = vst.msk [vmem:[%s282 + $0x28] sm:$0xff] %vm624, %v613
      %631 = vst.msk [vmem:[%s282 + $0x30] sm:$0xff] %vm624, %v614
      %632 = vst.msk [vmem:[%s282 + $0x38] sm:$0xff] %vm624, %v615
      %633 = vst.msk [vmem:[%s282 + $0x40] sm:$0xff] %vm624, %v616
      %634 = vst.msk [vmem:[%s282 + $0x48] sm:$0xff] %vm624, %v617
      %635 = vst.msk [vmem:[%s282 + $0x50] sm:$0xff] %vm624, %v618
      %636 = vst.msk [vmem:[%s282 + $0x58] sm:$0xff] %vm624, %v619
      %637 = vst.msk [vmem:[%s282 + $0x60] sm:$0xff] %vm624, %v620
      %638 = vst.msk [vmem:[%s282 + $0x68] sm:$0xff] %vm624, %v621
      %639 = vst.msk [vmem:[%s282 + $0x70] sm:$0xff] %vm624, %v622
      %640 = vst.msk [vmem:[%s282 + $0x78] sm:$0xff] %vm624, %v623
      %s641 = smul.u32 16, %s20
      %p642 = scmp.lt.s32.totalorder %s641, 31
      %s643 = scalar_select %p642, %s641, 31
      %s644 = smul.addr %s643, 8
      %s645 = scalar_lea.vmem %s7, %s644
      // Predicated region
      $region49: #{_lambda_.1} parent=47 // pred_check
        %p646 = pneg %p190
      $region50: #{_lambda_.1} parent=47 // pred_check_branch
        %648 = sbr.rel (%p646) target = $region52
      $region51: #{_lambda_.1} parent=47 // pred_region
        %s649 = smul.u32 16, %s20
      $region52: #{_lambda_.1} parent=47 // pred_fallthru
        _
    $region48: #{_lambda_.1} parent=5 // pred_fallthru
      _
    %p650 = scmp.le.s32.totalorder 2, %s15
    // Predicated region
    $region53: #{_lambda_.1} parent=5 // pred_check
      %p651 = pneg %p650
    $region54: #{_lambda_.1} parent=5 // pred_check_branch
      %653 = sbr.rel (%p651) target = $region56
    $region55: #{_lambda_.1} parent=5 // pred_region
      %s654 = ssub.s32 %s15, 2
      // Predicated region
      $region57: #{_lambda_.1} parent=55 // pred_check
        %p655 = pneg %p196
      $region58: #{_lambda_.1} parent=55 // pred_check_branch
        %657 = sbr.rel (%p655) target = $region60
      $region59: #{_lambda_.1} parent=55 // pred_region
        %s658 = smul.u32 16, %s21
        %p659 = scmp.lt.s32.totalorder %s658, 31
        %s660 = scalar_select %p659, %s658, 31
        %s661 = smul.addr %s660, 8
        %s662 = scalar_lea.vmem %s7, %s661
      $region60: #{_lambda_.1} parent=55 // pred_fallthru
        _
    $region56: #{_lambda_.1} parent=5 // pred_fallthru
      _
  $region6: #{_lambda_.1} parent=0 // loop_footer
    %s19 = sadd.s32 1, %s15
  $region7: #{_lambda_.1} parent=0 // loop_footer_branch
    %14 = sbr.rel target = $region3
  $region8: #{_lambda_.1} parent=0 // loop_exit
    _

</llo_original>
